<compile_context>
chip_gen: v6e
topology: v6e:2x2x1
jax: 0.10.0
libtpu: 0.0.40
codegen_flags: <defaults>
</compile_context>

<pallas_src>
import jax
import jax.numpy as jnp
from jax import lax
from jax.experimental import pallas as pl
from jax.experimental.pallas import tpu as pltpu


def basic_block_kernel(x_ref, b1_ref, b2_ref, out_ref):
    # x_ref:   (1, H, WC)  input in folded layout (W and C share the lane axis); also residual
    # b1_ref:  (3, WC, WC) conv1: one block-banded (W*Cin, W*Cout) matrix per kh tap
    # b2_ref:  (3, WC, WC) conv2
    # out_ref: (1, H, WC)
    H = out_ref.shape[1]
    mm_dtype = b1_ref.dtype  # f32 (exact) or bf16 (v6e/v7x throughput mode)

    x = x_ref[0]  # (H, WC) float32 — conv1 input and the residual; no slicing needed.

    # 0/1 row-shift matrices (iota + compare, applied on the otherwise-idle MXU):
    #   shift_dn @ a -> a[h-1] with a zero top row, shift_up @ a -> a[h+1] with a zero bottom
    # row. This is the kh (vertical) halo of the 3x3 conv; the kw halo + its zero padding are
    # already baked into b1_ref / b2_ref, so there are no sublane slices/rolls/masks at all.
    r = lax.broadcasted_iota(jnp.int32, (H, H), 0)
    c = lax.broadcasted_iota(jnp.int32, (H, H), 1)
    shift_dn = (c == r - 1).astype(jnp.float32)
    shift_up = (c == r + 1).astype(jnp.float32)

    def conv3x3_folded(act, b_ref):
        # act: (H, WC) f32. Returns f32 (H, WC): full 3x3 conv, stride 1, pad 1, no bias.
        act_dn = jnp.dot(shift_dn, act, preferred_element_type=jnp.float32)
        act_up = jnp.dot(shift_up, act, preferred_element_type=jnp.float32)
        acc = jnp.dot(act.astype(mm_dtype), b_ref[1],
                      preferred_element_type=jnp.float32)
        acc = acc + jnp.dot(act_dn.astype(mm_dtype), b_ref[0],
                            preferred_element_type=jnp.float32)
        acc = acc + jnp.dot(act_up.astype(mm_dtype), b_ref[2],
                            preferred_element_type=jnp.float32)
        return acc

    mid = jnp.maximum(conv3x3_folded(x, b1_ref), 0.0)          # conv1 + ReLU
    out = jnp.maximum(conv3x3_folded(mid, b2_ref) + x, 0.0)    # conv2 + residual + ReLU
    out_ref[0] = out.astype(out_ref.dtype)                     # lane-dense, unmasked store


def _fold_conv3x3_weight(w_hwio, width):
    """(3, 3, Cin, Cout) HWIO -> (3, W*Cin, W*Cout) block-banded matrices (one per kh tap).

    big[kh, w_in*Cin + ci, w_out*Cout + co] = w[kh, w_in - w_out + 1, ci, co] inside the band,
    0 outside, so `x_folded @ big[kh]` performs all kw taps and the W-direction zero padding
    for every output column in a single lane-dense MXU matmul.
    """
    nkh, nkw, cin, cout = w_hwio.shape
    w_in = jnp.arange(width)[:, None]
    w_out = jnp.arange(width)[None, :]
    tap = w_in - w_out + 1                       # which kw tap connects w_in -> w_out
    valid = (tap >= 0) & (tap < nkw)
    tap = jnp.clip(tap, 0, nkw - 1)
    blocks = w_hwio[:, tap] * valid[None, :, :, None, None].astype(w_hwio.dtype)
    # (kh, w_in, w_out, ci, co) -> (kh, w_in, ci, w_out, co) -> (kh, W*Cin, W*Cout)
    return blocks.transpose(0, 1, 3, 2, 4).reshape(nkh, width * cin, width * cout)


def basic_block_forward(x_nchw, w1_hwio, w2_hwio, matmul_dtype=jnp.float32):
    """x_nchw: (N, C, H, W) float32; weights HWIO (3,3,Cin,C) / (3,3,C,C).

    matmul_dtype=jnp.bfloat16 casts MXU operands to bf16 (f32 accumulation) — recommended on
    v6e/v7x; the f32 default matches the PyTorch module's numerics.
    """
    N, Cin, H, W = x_nchw.shape
    C = w1_hwio.shape[-1]
    assert Cin == C, "default BasicBlock (stride=1, no downsample) requires in_planes == planes"

    WC = W * C
    WCP = ((WC + 127) // 128) * 128              # pad the folded lane axis to a 128 multiple

    # NCHW -> NHWC -> fold (W, C) into one lane-dense axis.
    x_f = jnp.transpose(x_nchw, (0, 2, 3, 1)).reshape(N, H, WC)
    b1 = _fold_conv3x3_weight(w1_hwio, W)
    b2 = _fold_conv3x3_weight(w2_hwio, W)
    if WCP != WC:
        pad = WCP - WC
        x_f = jnp.pad(x_f, ((0, 0), (0, 0), (0, pad)))
        b1 = jnp.pad(b1, ((0, 0), (0, pad), (0, pad)))
        b2 = jnp.pad(b2, ((0, 0), (0, pad), (0, pad)))
    b1 = b1.astype(matmul_dtype)
    b2 = b2.astype(matmul_dtype)

    out_f = pl.pallas_call(
        basic_block_kernel,
        out_shape=jax.ShapeDtypeStruct((N, H, WCP), jnp.float32),
        grid_spec=pltpu.PrefetchScalarGridSpec(
            num_scalar_prefetch=0,
            grid=(N,),
            in_specs=[
                pl.BlockSpec((1, H, WCP), lambda n: (n, 0, 0)),
                pl.BlockSpec((3, WCP, WCP), lambda n: (0, 0, 0)),   # grid-invariant weights
                pl.BlockSpec((3, WCP, WCP), lambda n: (0, 0, 0)),
            ],
            out_specs=pl.BlockSpec((1, H, WCP), lambda n: (n, 0, 0)),
        ),
        compiler_params=pltpu.CompilerParams(
            dimension_semantics=("parallel",)),
    )(x_f, b1, b2)

    out = out_f[:, :, :WC].reshape(N, H, W, C)
    return jnp.transpose(out, (0, 3, 1, 2))      # back to NCHW to match the PyTorch module


def _reference_forward(x_nchw, w1_hwio, w2_hwio):
    """Pure-JAX reference using lax convolution (NHWC/HWIO), for verification."""
    x = jnp.transpose(x_nchw, (0, 2, 3, 1))
    dn = lax.conv_dimension_numbers(x.shape, w1_hwio.shape, ("NHWC", "HWIO", "NHWC"))
    out = lax.conv_general_dilated(x, w1_hwio, (1, 1), ((1, 1), (1, 1)),
                                   dimension_numbers=dn)
    out = jnp.maximum(out, 0.0)
    out = lax.conv_general_dilated(out, w2_hwio, (1, 1), ((1, 1), (1, 1)),
                                   dimension_numbers=dn)
    out = jnp.maximum(out + x, 0.0)
    return jnp.transpose(out, (0, 3, 1, 2))


if __name__ == "__main__":
    N, C, H, W = 2, 8, 16, 16   # in_planes == planes == 8; W*C = 128 -> exactly one lane tile

    key = jax.random.PRNGKey(0)
    kx, k1, k2 = jax.random.split(key, 3)

    x = jax.random.normal(kx, (N, C, H, W), dtype=jnp.float32)
    fan_in = 3 * 3 * C
    w1 = jax.random.normal(k1, (3, 3, C, C), dtype=jnp.float32) * (2.0 / fan_in) ** 0.5
    w2 = jax.random.normal(k2, (3, 3, C, C), dtype=jnp.float32) * (2.0 / fan_in) ** 0.5

    ref = jax.block_until_ready(_reference_forward(x, w1, w2))

    # f32 MXU operands: faithful to the PyTorch module's f32 forward pass.
    out = jax.block_until_ready(basic_block_forward(x, w1, w2))
    assert out.shape == (N, C, H, W)
    assert jnp.allclose(out, ref, atol=1e-3, rtol=1e-3), "f32 kernel mismatch vs reference conv"

    # bf16 MXU operands with f32 accumulation: recommended throughput mode on v6e/v7x.
    out_bf16 = jax.block_until_ready(
        basic_block_forward(x, w1, w2, matmul_dtype=jnp.bfloat16))
    assert jnp.allclose(out_bf16, ref, atol=1e-1, rtol=1e-1), "bf16 kernel mismatch vs reference"

    print("KERNEL_OK")
</pallas_src>

<mosaic_0001>
module attributes {stable_mosaic.version = 11 : i64} {
  func.func @basic_block_kernel(%arg0: i32, %arg1: memref<1x16x128xf32, #tpu.memory_space<vmem>>, %arg2: memref<3x128x128xf32, #tpu.memory_space<vmem>>, %arg3: memref<3x128x128xf32, #tpu.memory_space<vmem>>, %arg4: memref<1x16x128xf32, #tpu.memory_space<vmem>>) attributes {dimension_semantics = [#tpu.dimension_semantics<parallel>], iteration_bounds = array<i64: 2>, scalar_prefetch = 0 : i64, scratch_operands = 0 : i64, tpu.core_type = #tpu.core_type<tc>, window_params = [{transform_indices = @transform_0, window_bounds = array<i64: 1, 16, 128>}, {pipeline_mode = #tpu.pipeline_mode<synchronous>, transform_indices = @transform_1, window_bounds = array<i64: 3, 128, 128>}, {pipeline_mode = #tpu.pipeline_mode<synchronous>, transform_indices = @transform_2, window_bounds = array<i64: 3, 128, 128>}, {transform_indices = @transform_3, window_bounds = array<i64: 1, 16, 128>}]} {
    %c0 = arith.constant 0 : index
    %c0_0 = arith.constant 0 : index
    %c0_1 = arith.constant 0 : index
    %0 = vector.load %arg1[%c0, %c0_0, %c0_1] : memref<1x16x128xf32, #tpu.memory_space<vmem>>, vector<1x16x128xf32>
    %1 = vector.shape_cast %0 : vector<1x16x128xf32> to vector<16x128xf32>
    %2 = tpu.iota {dimensions = array<i32: 0>} : vector<16x16xi32>
    %3 = tpu.iota {dimensions = array<i32: 1>} : vector<16x16xi32>
    %c1_i32 = arith.constant 1 : i32
    %4 = vector.broadcast %c1_i32 : i32 to vector<16x16xi32>
    %5 = arith.subi %2, %4 : vector<16x16xi32>
    %6 = arith.cmpi eq, %3, %5 : vector<16x16xi32>
    %7 = arith.extui %6 : vector<16x16xi1> to vector<16x16xi32>
    %8 = arith.sitofp %7 : vector<16x16xi32> to vector<16x16xf32>
    %c1_i32_2 = arith.constant 1 : i32
    %9 = vector.broadcast %c1_i32_2 : i32 to vector<16x16xi32>
    %10 = arith.addi %2, %9 : vector<16x16xi32>
    %11 = arith.cmpi eq, %3, %10 : vector<16x16xi32>
    %12 = arith.extui %11 : vector<16x16xi1> to vector<16x16xi32>
    %13 = arith.sitofp %12 : vector<16x16xi32> to vector<16x16xf32>
    %cst = arith.constant dense<0.000000e+00> : vector<16x128xf32>
    %14 = tpu.matmul %8, %1, %cst {dimension_numbers = #tpu.dot_dimension_numbers<[1], [0], [0], [1], [0, 0, 1, 1], [], []>} : vector<16x16xf32>, vector<16x128xf32>, vector<16x128xf32> -> vector<16x128xf32>
    %cst_3 = arith.constant dense<0.000000e+00> : vector<16x128xf32>
    %15 = tpu.matmul %13, %1, %cst_3 {dimension_numbers = #tpu.dot_dimension_numbers<[1], [0], [0], [1], [0, 0, 1, 1], [], []>} : vector<16x16xf32>, vector<16x128xf32>, vector<16x128xf32> -> vector<16x128xf32>
    %c1 = arith.constant 1 : index
    %c0_4 = arith.constant 0 : index
    %c0_5 = arith.constant 0 : index
    %16 = vector.load %arg2[%c1, %c0_4, %c0_5] : memref<3x128x128xf32, #tpu.memory_space<vmem>>, vector<1x128x128xf32>
    %17 = vector.shape_cast %16 : vector<1x128x128xf32> to vector<128x128xf32>
    %cst_6 = arith.constant dense<0.000000e+00> : vector<16x128xf32>
    %18 = tpu.matmul %1, %17, %cst_6 {dimension_numbers = #tpu.dot_dimension_numbers<[1], [0], [0], [1], [0, 0, 1, 1], [], []>} : vector<16x128xf32>, vector<128x128xf32>, vector<16x128xf32> -> vector<16x128xf32>
    %c0_7 = arith.constant 0 : index
    %c0_8 = arith.constant 0 : index
    %c0_9 = arith.constant 0 : index
    %19 = vector.load %arg2[%c0_7, %c0_8, %c0_9] : memref<3x128x128xf32, #tpu.memory_space<vmem>>, vector<1x128x128xf32>
    %20 = vector.shape_cast %19 : vector<1x128x128xf32> to vector<128x128xf32>
    %cst_10 = arith.constant dense<0.000000e+00> : vector<16x128xf32>
    %21 = tpu.matmul %14, %20, %cst_10 {dimension_numbers = #tpu.dot_dimension_numbers<[1], [0], [0], [1], [0, 0, 1, 1], [], []>} : vector<16x128xf32>, vector<128x128xf32>, vector<16x128xf32> -> vector<16x128xf32>
    %22 = arith.addf %18, %21 : vector<16x128xf32>
    %c2 = arith.constant 2 : index
    %c0_11 = arith.constant 0 : index
    %c0_12 = arith.constant 0 : index
    %23 = vector.load %arg2[%c2, %c0_11, %c0_12] : memref<3x128x128xf32, #tpu.memory_space<vmem>>, vector<1x128x128xf32>
    %24 = vector.shape_cast %23 : vector<1x128x128xf32> to vector<128x128xf32>
    %cst_13 = arith.constant dense<0.000000e+00> : vector<16x128xf32>
    %25 = tpu.matmul %15, %24, %cst_13 {dimension_numbers = #tpu.dot_dimension_numbers<[1], [0], [0], [1], [0, 0, 1, 1], [], []>} : vector<16x128xf32>, vector<128x128xf32>, vector<16x128xf32> -> vector<16x128xf32>
    %26 = arith.addf %22, %25 : vector<16x128xf32>
    %cst_14 = arith.constant 0.000000e+00 : f32
    %27 = vector.broadcast %cst_14 : f32 to vector<16x128xf32>
    %28 = arith.maximumf %26, %27 : vector<16x128xf32>
    %cst_15 = arith.constant dense<0.000000e+00> : vector<16x128xf32>
    %29 = tpu.matmul %8, %28, %cst_15 {dimension_numbers = #tpu.dot_dimension_numbers<[1], [0], [0], [1], [0, 0, 1, 1], [], []>} : vector<16x16xf32>, vector<16x128xf32>, vector<16x128xf32> -> vector<16x128xf32>
    %cst_16 = arith.constant dense<0.000000e+00> : vector<16x128xf32>
    %30 = tpu.matmul %13, %28, %cst_16 {dimension_numbers = #tpu.dot_dimension_numbers<[1], [0], [0], [1], [0, 0, 1, 1], [], []>} : vector<16x16xf32>, vector<16x128xf32>, vector<16x128xf32> -> vector<16x128xf32>
    %c1_17 = arith.constant 1 : index
    %c0_18 = arith.constant 0 : index
    %c0_19 = arith.constant 0 : index
    %31 = vector.load %arg3[%c1_17, %c0_18, %c0_19] : memref<3x128x128xf32, #tpu.memory_space<vmem>>, vector<1x128x128xf32>
    %32 = vector.shape_cast %31 : vector<1x128x128xf32> to vector<128x128xf32>
    %cst_20 = arith.constant dense<0.000000e+00> : vector<16x128xf32>
    %33 = tpu.matmul %28, %32, %cst_20 {dimension_numbers = #tpu.dot_dimension_numbers<[1], [0], [0], [1], [0, 0, 1, 1], [], []>} : vector<16x128xf32>, vector<128x128xf32>, vector<16x128xf32> -> vector<16x128xf32>
    %c0_21 = arith.constant 0 : index
    %c0_22 = arith.constant 0 : index
    %c0_23 = arith.constant 0 : index
    %34 = vector.load %arg3[%c0_21, %c0_22, %c0_23] : memref<3x128x128xf32, #tpu.memory_space<vmem>>, vector<1x128x128xf32>
    %35 = vector.shape_cast %34 : vector<1x128x128xf32> to vector<128x128xf32>
    %cst_24 = arith.constant dense<0.000000e+00> : vector<16x128xf32>
    %36 = tpu.matmul %29, %35, %cst_24 {dimension_numbers = #tpu.dot_dimension_numbers<[1], [0], [0], [1], [0, 0, 1, 1], [], []>} : vector<16x128xf32>, vector<128x128xf32>, vector<16x128xf32> -> vector<16x128xf32>
    %37 = arith.addf %33, %36 : vector<16x128xf32>
    %c2_25 = arith.constant 2 : index
    %c0_26 = arith.constant 0 : index
    %c0_27 = arith.constant 0 : index
    %38 = vector.load %arg3[%c2_25, %c0_26, %c0_27] : memref<3x128x128xf32, #tpu.memory_space<vmem>>, vector<1x128x128xf32>
    %39 = vector.shape_cast %38 : vector<1x128x128xf32> to vector<128x128xf32>
    %cst_28 = arith.constant dense<0.000000e+00> : vector<16x128xf32>
    %40 = tpu.matmul %30, %39, %cst_28 {dimension_numbers = #tpu.dot_dimension_numbers<[1], [0], [0], [1], [0, 0, 1, 1], [], []>} : vector<16x128xf32>, vector<128x128xf32>, vector<16x128xf32> -> vector<16x128xf32>
    %41 = arith.addf %37, %40 : vector<16x128xf32>
    %42 = arith.addf %41, %1 : vector<16x128xf32>
    %cst_29 = arith.constant 0.000000e+00 : f32
    %43 = vector.broadcast %cst_29 : f32 to vector<16x128xf32>
    %44 = arith.maximumf %42, %43 : vector<16x128xf32>
    %c0_30 = arith.constant 0 : index
    %c0_31 = arith.constant 0 : index
    %c0_32 = arith.constant 0 : index
    %45 = vector.load %arg4[%c0_30, %c0_31, %c0_32] : memref<1x16x128xf32, #tpu.memory_space<vmem>>, vector<1x16x128xf32>
    %46 = vector.shape_cast %45 : vector<1x16x128xf32> to vector<16x128xf32>
    %47 = vector.shape_cast %44 : vector<16x128xf32> to vector<1x16x128xf32>
    tpu.vector_store %arg4[%c0_30, %c0_31, %c0_32], %47 {strides = array<i32>} : memref<1x16x128xf32, #tpu.memory_space<vmem>>, vector<1x16x128xf32>,
    return
  }
  func.func @transform_0(%arg0: i32) -> (i32, i32, i32) {
    %c0_i32 = arith.constant 0 : i32
    %c0_i32_0 = arith.constant 0 : i32
    %c0_i32_1 = arith.constant 0 : i32
    return %arg0, %c0_i32, %c0_i32_0 : i32, i32, i32
  }
  func.func @transform_1(%arg0: i32) -> (i32, i32, i32) {
    %c0_i32 = arith.constant 0 : i32
    %c0_i32_0 = arith.constant 0 : i32
    %c0_i32_1 = arith.constant 0 : i32
    %c0_i32_2 = arith.constant 0 : i32
    return %c0_i32, %c0_i32_0, %c0_i32_1 : i32, i32, i32
  }
  func.func @transform_2(%arg0: i32) -> (i32, i32, i32) {
    %c0_i32 = arith.constant 0 : i32
    %c0_i32_0 = arith.constant 0 : i32
    %c0_i32_1 = arith.constant 0 : i32
    %c0_i32_2 = arith.constant 0 : i32
    return %c0_i32, %c0_i32_0, %c0_i32_1 : i32, i32, i32
  }
  func.func @transform_3(%arg0: i32) -> (i32, i32, i32) {
    %c0_i32 = arith.constant 0 : i32
    %c0_i32_0 = arith.constant 0 : i32
    %c0_i32_1 = arith.constant 0 : i32
    return %arg0, %c0_i32, %c0_i32_0 : i32, i32, i32
  }
}

</mosaic_0001>

<llo_original>
// kernel: tpu_custom_call.1
$region0: #{tpu_custom_call.1}
  #allocation0 [shape = 'u32[]', space=smem, size = 0x4, offset = 0x4, fixed_abs, tag = 'smem constant byte address 0x4 - core index']
  #allocation1 [shape = 'u32[144,128]{1,0:T(1,128)}', space=vmem, size = 0x12000, scoped, tag = 'internal scratch']
  %s0 = inlined_call_operand.hbm [shape: f32[2,16,128], index: 0, kind: input, shape index: {}]
  %s1 = inlined_call_operand.hbm [shape: f32[3,128,128], index: 1, kind: input, shape index: {}]
  %s2 = inlined_call_operand.hbm [shape: f32[3,128,128], index: 2, kind: input, shape index: {}]
  %s3 = inlined_call_operand.hbm [shape: f32[2,16,128], index: 3, kind: output, shape index: {}]
  %s4 = sld [smem:[#allocation0]]
  $region57: #{tpu_custom_call.1} parent=0
    _
  %s6 = ssub.s32 1, %s4
  %s7 = scalar_select 0, %s6, %s4
  $region1: #{tpu_custom_call.1} parent=0
    #allocation2 [shape = 'u8[16384]{0}', space=vmem, size = 0x4000, scoped, tag = 'input window, operand 0']
    #allocation3 [shape = 's32[2]{0}', space=sflag, size = 0x8, scoped, tag = 'scoped memory for tpu_custom_call.1']
    #allocation4 [shape = 's32[2]{0}', space=sflag, size = 0x8, scoped, tag = 'scoped memory for tpu_custom_call.1']
    #allocation5 [shape = 'u8[196608]{0}', space=vmem, size = 0x30000, scoped, tag = 'input window, operand 1, single buffered']
    #allocation6 [shape = 's32[1]{0}', space=sflag, size = 0x4, scoped, tag = 'scoped memory for tpu_custom_call.1']
    #allocation7 [shape = 'u8[196608]{0}', space=vmem, size = 0x30000, scoped, tag = 'input window, operand 2, single buffered']
    #allocation8 [shape = 'u8[16384]{0}', space=vmem, size = 0x4000, scoped, tag = 'output window, operand 0']
    %8 = vsyncpa [#allocation3], 0
    %s9 = scalar_lea.sflag [#allocation3], 1
    %10 = vsyncpa %s9, 0
    %11 = vsyncpa [#allocation6], 0
    %12 = vsyncpa [#allocation4], 0
    %s13 = scalar_lea.sflag [#allocation4], 1
    %14 = vsyncpa %s13, 0
    loop: start=0, step=1, limit=4
    $region2: #{tpu_custom_call.1} parent=1 // loop_pre_header
      _
    $region3: #{tpu_custom_call.1} parent=1 // loop_header
      %s16 = sphi 0, %s20
      %p17 = scmp.ge.s32.totalorder %s16, 4
      %s26 = sphi 0, %s28
      %s29 = sphi 0, %s26
      %s30 = sphi 0, %s29
      %s46 = sphi 0, %s30
      %s50 = sphi 0, %s50
      %s52 = sphi 0, %s50
      %s53 = sphi 0, %s52
      %s67 = sphi 0, %s53
      %s71 = sphi 0, %s71
      %s73 = sphi 0, %s71
      %s74 = sphi 0, %s73
      %s88 = sphi 0, %s74
      %s94 = sphi 0, %s96
      %s97 = sphi 0, %s94
      %s98 = sphi 0, %s97
      %s114 = sphi 0, %s98
    $region4: #{tpu_custom_call.1} parent=1 // loop_header_branch
      %19 = sbr.rel (%p17) target = $region8
    $region5: #{tpu_custom_call.1} parent=1 // loop_body
      %s21 = ssub.s32 %s16, 1
      %s22 = ssub.s32 %s16, 2
      %s23 = sadd.s32 %s16, 1
      %s24 = ssub.s32 %s16, %s23
      %p25 = scmp.eq.s32.totalorder %s24, 0
      %s27 = sadd.s32 %s26, 1
      %s28 = scalar_select %p25, %s26, %s27
      %p31 = pneg %p25
      %p32 = scmp.eq.s32.totalorder %s16, 1
      %p33 = por %p31, %p32
      %p34 = scmp.ne.s32.totalorder %s26, %s29
      %p35 = scmp.eq.s32.totalorder %s16, 0
      %p36 = por %p34, %p35
      %p37 = scmp.ne.s32.totalorder %s26, %s29
      %p38 = scmp.eq.s32.totalorder %s21, 1
      %p39 = por %p37, %p38
      %p40 = scmp.ne.s32.totalorder %s29, %s30
      %p41 = scmp.eq.s32.totalorder %s21, 0
      %p42 = por %p40, %p41
      %p43 = scmp.ne.s32.totalorder %s29, %s30
      %p44 = scmp.eq.s32.totalorder %s22, 1
      %p45 = por %p43, %p44
      %p47 = scmp.ne.s32.totalorder %s30, %s46
      %p48 = scmp.eq.s32.totalorder %s22, 0
      %p49 = por %p47, %p48
      %s51 = sadd.s32 %s50, 1
      %p54 = scmp.eq.s32.totalorder %s16, 1
      %p55 = scmp.ne.s32.totalorder %s50, %s52
      %p56 = scmp.eq.s32.totalorder %s16, 0
      %p57 = por %p55, %p56
      %p58 = scmp.ne.s32.totalorder %s50, %s52
      %p59 = scmp.eq.s32.totalorder %s21, 1
      %p60 = por %p58, %p59
      %p61 = scmp.ne.s32.totalorder %s52, %s53
      %p62 = scmp.eq.s32.totalorder %s21, 0
      %p63 = por %p61, %p62
      %p64 = scmp.ne.s32.totalorder %s52, %s53
      %p65 = scmp.eq.s32.totalorder %s22, 1
      %p66 = por %p64, %p65
      %p68 = scmp.ne.s32.totalorder %s53, %s67
      %p69 = scmp.eq.s32.totalorder %s22, 0
      %p70 = por %p68, %p69
      %s72 = sadd.s32 %s71, 1
      %p75 = scmp.eq.s32.totalorder %s16, 1
      %p76 = scmp.ne.s32.totalorder %s71, %s73
      %p77 = scmp.eq.s32.totalorder %s16, 0
      %p78 = por %p76, %p77
      %p79 = scmp.ne.s32.totalorder %s71, %s73
      %p80 = scmp.eq.s32.totalorder %s21, 1
      %p81 = por %p79, %p80
      %p82 = scmp.ne.s32.totalorder %s73, %s74
      %p83 = scmp.eq.s32.totalorder %s21, 0
      %p84 = por %p82, %p83
      %p85 = scmp.ne.s32.totalorder %s73, %s74
      %p86 = scmp.eq.s32.totalorder %s22, 1
      %p87 = por %p85, %p86
      %p89 = scmp.ne.s32.totalorder %s74, %s88
      %p90 = scmp.eq.s32.totalorder %s22, 0
      %p91 = por %p89, %p90
      %s92 = ssub.s32 %s16, %s23
      %p93 = scmp.eq.s32.totalorder %s92, 0
      %s95 = sadd.s32 %s94, 1
      %s96 = scalar_select %p93, %s94, %s95
      %p99 = pneg %p93
      %p100 = scmp.eq.s32.totalorder %s16, 1
      %p101 = por %p99, %p100
      %p102 = scmp.ne.s32.totalorder %s94, %s97
      %p103 = scmp.eq.s32.totalorder %s16, 0
      %p104 = por %p102, %p103
      %p105 = scmp.ne.s32.totalorder %s94, %s97
      %p106 = scmp.eq.s32.totalorder %s21, 1
      %p107 = por %p105, %p106
      %p108 = scmp.ne.s32.totalorder %s97, %s98
      %p109 = scmp.eq.s32.totalorder %s21, 0
      %p110 = por %p108, %p109
      %p111 = scmp.ne.s32.totalorder %s97, %s98
      %p112 = scmp.eq.s32.totalorder %s22, 1
      %p113 = por %p111, %p112
      %p115 = scmp.ne.s32.totalorder %s98, %s114
      %p116 = scmp.eq.s32.totalorder %s22, 0
      %p117 = por %p115, %p116
      %p118 = scmp.le.s32.totalorder 1, %s16
      %p119 = scmp.lt.s32.totalorder %s16, 3
      %p120 = pnand %p118, %p119
      %p121 = pneg %p120
      // Predicated region
      $region9: #{tpu_custom_call.1} parent=5 // pred_check
        _
      $region10: #{tpu_custom_call.1} parent=5 // pred_check_branch
        %123 = sbr.rel (%p120) target = $region12
      $region11: #{tpu_custom_call.1} parent=5 // pred_region
        %s124 = ssub.s32 %s16, 1
        // Predicated region
        $region13: #{tpu_custom_call.1} parent=11 // pred_check
          %p125 = pneg %p63
        $region14: #{tpu_custom_call.1} parent=11 // pred_check_branch
          %127 = sbr.rel (%p125) target = $region16
        $region15: #{tpu_custom_call.1} parent=11 // pred_region
          %s129 = ssub.s32 6144, 6144
          %130 = vsyncadd [#allocation6], %s129
          %s131 = sshll.u32 [#allocation5], 4
          %s132 = int_to_ptr.vmem [resolvable:$true] %s131
          %137 = dma.hbm_to_vmem [thread:$0]  %s1, 6144, %s132, [#allocation6], 128, 128, 8
        $region16: #{tpu_custom_call.1} parent=11 // pred_fallthru
          _
        // Predicated region
        $region17: #{tpu_custom_call.1} parent=11 // pred_check
          %p138 = pneg %p84
        $region18: #{tpu_custom_call.1} parent=11 // pred_check_branch
          %140 = sbr.rel (%p138) target = $region20
        $region19: #{tpu_custom_call.1} parent=11 // pred_region
          %s142 = ssub.s32 6144, 6144
          %143 = vsyncadd [#allocation6], %s142
          %s144 = sshll.u32 [#allocation7], 4
          %s145 = int_to_ptr.vmem [resolvable:$true] %s144
          %150 = dma.hbm_to_vmem [thread:$0]  %s2, 6144, %s145, [#allocation6], 128, 128, 8
        $region20: #{tpu_custom_call.1} parent=11 // pred_fallthru
          _
      $region12: #{tpu_custom_call.1} parent=5 // pred_fallthru
        _
      %p151 = scmp.lt.s32.totalorder %s16, 2
      // Predicated region
      $region21: #{tpu_custom_call.1} parent=5 // pred_check
        %p152 = pneg %p151
      $region22: #{tpu_custom_call.1} parent=5 // pred_check_branch
        %154 = sbr.rel (%p152) target = $region24
      $region23: #{tpu_custom_call.1} parent=5 // pred_region
        // Predicated region
        $region25: #{tpu_custom_call.1} parent=23 // pred_check
          %p155 = pneg %p36
        $region26: #{tpu_custom_call.1} parent=23 // pred_check_branch
          %157 = sbr.rel (%p155) target = $region28
        $region27: #{tpu_custom_call.1} parent=23 // pred_region
          %s158 = sand.u32 %s26, 1
          %s159 = scalar_lea.sflag [#allocation3], %s158
          %s160 = sand.u32 %s26, 1
          %s161 = smul.addr %s160, 16
          %s162 = scalar_lea.vmem [#allocation2], %s161
          %s164 = ssub.s32 256, 256
          %165 = vsyncadd %s159, %s164
          %s166 = smul.addr %s16, 2
          %s167 = smul.addr %s166, 128
          %s168 = scalar_lea.hbm %s0, %s167
          %s169 = sshll.u32 %s162, 4
          %s170 = int_to_ptr.vmem [resolvable:$true] %s169
          %175 = dma.hbm_to_vmem [thread:$0]  %s168, 256, %s170, %s159, 128, 128, 8
        $region28: #{tpu_custom_call.1} parent=23 // pred_fallthru
          _
      $region24: #{tpu_custom_call.1} parent=5 // pred_fallthru
        _
      %p176 = scmp.le.s32.totalorder 1, %s16
      %p177 = scmp.lt.s32.totalorder %s16, 3
      %p178 = pnand %p176, %p177
      %p179 = pneg %p178
      // Predicated region
      $region29: #{tpu_custom_call.1} parent=5 // pred_check
        _
      $region30: #{tpu_custom_call.1} parent=5 // pred_check_branch
        %181 = sbr.rel (%p178) target = $region32
      $region31: #{tpu_custom_call.1} parent=5 // pred_region
        %s182 = ssub.s32 %s16, 1
        %s183 = sand.u32 %s29, 1
        %s184 = scalar_lea.sflag [#allocation3], %s183
        %s185 = sand.u32 %s29, 1
        %s186 = smul.addr %s185, 16
        %s187 = scalar_lea.vmem [#allocation2], %s186
        // Predicated region
        $region33: #{tpu_custom_call.1} parent=31 // pred_check
          %p188 = pneg %p42
        $region34: #{tpu_custom_call.1} parent=31 // pred_check_branch
          %190 = sbr.rel (%p188) target = $region36
        $region35: #{tpu_custom_call.1} parent=31 // pred_region
          %191 = dma.done %s184, 256
        $region36: #{tpu_custom_call.1} parent=31 // pred_fallthru
          _
        // Predicated region
        $region37: #{tpu_custom_call.1} parent=31 // pred_check
          %p192 = pneg %p63
        $region38: #{tpu_custom_call.1} parent=31 // pred_check_branch
          %194 = sbr.rel (%p192) target = $region40
        $region39: #{tpu_custom_call.1} parent=31 // pred_region
          %195 = dma.done [#allocation6], 6144
        $region40: #{tpu_custom_call.1} parent=31 // pred_fallthru
          _
        // Predicated region
        $region41: #{tpu_custom_call.1} parent=31 // pred_check
          %p196 = pneg %p84
        $region42: #{tpu_custom_call.1} parent=31 // pred_check_branch
          %198 = sbr.rel (%p196) target = $region44
        $region43: #{tpu_custom_call.1} parent=31 // pred_region
          %199 = dma.done [#allocation6], 6144
        $region44: #{tpu_custom_call.1} parent=31 // pred_fallthru
          _
        %s200 = sand.u32 %s29, 1
        %s201 = scalar_lea.sflag [#allocation3], %s200
        %s202 = sand.u32 %s29, 1
        %s203 = smul.addr %s202, 16
        %s204 = scalar_lea.vmem [#allocation2], %s203
        %p205 = pneg %p42
        %p206 = pneg %p39
        %p207 = pneg %p63
        %p208 = pneg %p60
        %p209 = pneg %p84
        %p210 = pneg %p81
        %p211 = pneg %p110
        %p212 = pneg %p107
        %s213 = sand.u32 %s97, 1
        %s214 = scalar_lea.sflag [#allocation4], %s213
        %s215 = sand.u32 %s97, 1
        %s216 = smul.addr %s215, 16
        %s217 = scalar_lea.vmem [#allocation8], %s216
        %v218 = vld [vmem:[%s187] sm:$0xff]
        %v219 = vld [vmem:[%s187 + $0x8] sm:$0xff]
        %v220 = vlaneseq
        %v221 = vshrl.u32 %v220, 7
        %v222 = vadd.s32 %v221, 8
        %v223 = vlaneseq
        %v224 = vand.u32 %v223, 127
        %v225 = vsub.s32 %v221, 1
        %v226 = vsub.s32 %v222, 1
        %vm227 = vcmp.eq.s32.totalorder %v224, %v225
        %vm228 = vcmp.eq.s32.totalorder %v224, %v226
        %v229 = vsel %vm227, 1, 0
        %v230 = vsel %vm228, 1, 0
        %v231 = vcvt.s32.f32 %v229
        %v232 = vcvt.s32.f32 %v230
        %v233 = vadd.s32 %v221, 1
        %v234 = vadd.s32 %v222, 1
        %vm235 = vcmp.eq.s32.totalorder %v224, %v233
        %vm236 = vcmp.eq.s32.totalorder %v224, %v234
        %v237 = vsel %vm235, 1, 0
        %v238 = vsel %vm236, 1, 0
        %v239 = vcvt.s32.f32 %v237
        %v240 = vcvt.s32.f32 %v238
        %vm241 = vcmask 130048
        %v243 = vsel %vm241, %v231, 0
        %v246 = vsel %vm241, %v232, 0
        %248 = vmatprep.subr.mxu0 0.0
        %249 = vmatpush1.msra.mxu0 0.0
        %250 = vmatprep.subr.mxu0 0.0
        %251 = vmatpush1.msra.mxu0 0.0
        %252 = vmatprep.subr.mxu0 0.0
        %253 = vmatpush1.msra.mxu0 0.0
        %254 = vmatprep.subr.mxu0 0.0
        %255 = vmatpush1.msra.mxu0 0.0
        %256 = vmatprep.subr.mxu0 0.0
        %257 = vmatpush1.msra.mxu0 0.0
        %258 = vmatprep.subr.mxu0 0.0
        %259 = vmatpush1.msra.mxu0 0.0
        %260 = vmatprep.subr.mxu0 0.0
        %261 = vmatpush1.msra.mxu0 0.0
        %262 = vmatprep.subr.mxu0 0.0
        %263 = vmatpush1.msra.mxu0 0.0
        %264 = vmatprep.subr.mxu0 0.0
        %265 = vmatpush1.msra.mxu0 0.0
        %266 = vmatprep.subr.mxu0 0.0
        %267 = vmatpush1.msra.mxu0 0.0
        %268 = vmatprep.subr.mxu0 0.0
        %269 = vmatpush1.msra.mxu0 0.0
        %270 = vmatprep.subr.mxu0 0.0
        %271 = vmatpush1.msra.mxu0 0.0
        %272 = vmatprep.subr.mxu0 0.0
        %273 = vmatpush1.msra.mxu0 0.0
        %274 = vmatprep.subr.mxu0 0.0
        %275 = vmatpush1.msra.mxu0 0.0
        %276 = vmatprep.subr.mxu0 0.0
        %277 = vmatpush1.msra.mxu0 %v219
        %278 = vmatprep.subr.mxu0 0.0
        %279 = vmatpush1.msra.mxu0 %v218
        %280 = vmatprep.subr.mxu0 0.0
        %281 = vmatpush2.msra.mxu0 0.0
        %282 = vmatprep.subr.mxu0 0.0
        %283 = vmatpush2.msra.mxu0 0.0
        %284 = vmatprep.subr.mxu0 0.0
        %285 = vmatpush2.msra.mxu0 0.0
        %286 = vmatprep.subr.mxu0 0.0
        %287 = vmatpush2.msra.mxu0 0.0
        %288 = vmatprep.subr.mxu0 0.0
        %289 = vmatpush2.msra.mxu0 0.0
        %290 = vmatprep.subr.mxu0 0.0
        %291 = vmatpush2.msra.mxu0 0.0
        %292 = vmatprep.subr.mxu0 0.0
        %293 = vmatpush2.msra.mxu0 0.0
        %294 = vmatprep.subr.mxu0 0.0
        %295 = vmatpush2.msra.mxu0 0.0
        %296 = vmatprep.subr.mxu0 0.0
        %297 = vmatpush2.msra.mxu0 0.0
        %298 = vmatprep.subr.mxu0 0.0
        %299 = vmatpush2.msra.mxu0 0.0
        %300 = vmatprep.subr.mxu0 0.0
        %301 = vmatpush2.msra.mxu0 0.0
        %302 = vmatprep.subr.mxu0 0.0
        %303 = vmatpush2.msra.mxu0 0.0
        %304 = vmatprep.subr.mxu0 0.0
        %305 = vmatpush2.msra.mxu0 0.0
        %306 = vmatprep.subr.mxu0 0.0
        %307 = vmatpush2.msra.mxu0 0.0
        %308 = vmatprep.subr.mxu0 0.0
        %309 = vmatpush2.msra.mxu0 0.0
        %310 = vmatprep.subr.mxu0 0.0
        %311 = vmatpush2.msra.mxu0 0.0
        %312 = vmatprep.mubr.f32.mxu0 0.0
        %313 = vmatmul.mubr.f32.gmra.mxu0 %v243
        %v314 = vpop.f32.mrf.mxu0
        %v315 = vadd.f32 0.0, %v314
        %v316 = vpop.f32.mrf.mxu0
        %317 = vmatprep.mubr.f32.mxu0 0.0
        %318 = vmatmul.mubr.f32.gmra.mxu0 %v246
        %v319 = vpop.f32.mrf.mxu0
        %v320 = vadd.f32 0.0, %v319
        %v321 = vpop.f32.mrf.mxu0
        %322 = vdwg.mxu0
        %v324 = vsel %vm241, %v239, 0
        %v327 = vsel %vm241, %v240, 0
        %329 = vmatprep.subr.mxu0 0.0
        %330 = vmatpush1.msra.mxu0 0.0
        %331 = vmatprep.subr.mxu0 0.0
        %332 = vmatpush1.msra.mxu0 0.0
        %333 = vmatprep.subr.mxu0 0.0
        %334 = vmatpush1.msra.mxu0 0.0
        %335 = vmatprep.subr.mxu0 0.0
        %336 = vmatpush1.msra.mxu0 0.0
        %337 = vmatprep.subr.mxu0 0.0
        %338 = vmatpush1.msra.mxu0 0.0
        %339 = vmatprep.subr.mxu0 0.0
        %340 = vmatpush1.msra.mxu0 0.0
        %341 = vmatprep.subr.mxu0 0.0
        %342 = vmatpush1.msra.mxu0 0.0
        %343 = vmatprep.subr.mxu0 0.0
        %344 = vmatpush1.msra.mxu0 0.0
        %345 = vmatprep.subr.mxu0 0.0
        %346 = vmatpush1.msra.mxu0 0.0
        %347 = vmatprep.subr.mxu0 0.0
        %348 = vmatpush1.msra.mxu0 0.0
        %349 = vmatprep.subr.mxu0 0.0
        %350 = vmatpush1.msra.mxu0 0.0
        %351 = vmatprep.subr.mxu0 0.0
        %352 = vmatpush1.msra.mxu0 0.0
        %353 = vmatprep.subr.mxu0 0.0
        %354 = vmatpush1.msra.mxu0 0.0
        %355 = vmatprep.subr.mxu0 0.0
        %356 = vmatpush1.msra.mxu0 0.0
        %357 = vmatprep.subr.mxu0 0.0
        %358 = vmatpush1.msra.mxu0 %v219
        %359 = vmatprep.subr.mxu0 0.0
        %360 = vmatpush1.msra.mxu0 %v218
        %361 = vmatprep.subr.mxu0 0.0
        %362 = vmatpush2.msra.mxu0 0.0
        %363 = vmatprep.subr.mxu0 0.0
        %364 = vmatpush2.msra.mxu0 0.0
        %365 = vmatprep.subr.mxu0 0.0
        %366 = vmatpush2.msra.mxu0 0.0
        %367 = vmatprep.subr.mxu0 0.0
        %368 = vmatpush2.msra.mxu0 0.0
        %369 = vmatprep.subr.mxu0 0.0
        %370 = vmatpush2.msra.mxu0 0.0
        %371 = vmatprep.subr.mxu0 0.0
        %372 = vmatpush2.msra.mxu0 0.0
        %373 = vmatprep.subr.mxu0 0.0
        %374 = vmatpush2.msra.mxu0 0.0
        %375 = vmatprep.subr.mxu0 0.0
        %376 = vmatpush2.msra.mxu0 0.0
        %377 = vmatprep.subr.mxu0 0.0
        %378 = vmatpush2.msra.mxu0 0.0
        %379 = vmatprep.subr.mxu0 0.0
        %380 = vmatpush2.msra.mxu0 0.0
        %381 = vmatprep.subr.mxu0 0.0
        %382 = vmatpush2.msra.mxu0 0.0
        %383 = vmatprep.subr.mxu0 0.0
        %384 = vmatpush2.msra.mxu0 0.0
        %385 = vmatprep.subr.mxu0 0.0
        %386 = vmatpush2.msra.mxu0 0.0
        %387 = vmatprep.subr.mxu0 0.0
        %388 = vmatpush2.msra.mxu0 0.0
        %389 = vmatprep.subr.mxu0 0.0
        %390 = vmatpush2.msra.mxu0 0.0
        %391 = vmatprep.subr.mxu0 0.0
        %392 = vmatpush2.msra.mxu0 0.0
        %393 = vmatprep.mubr.f32.mxu0 0.0
        %394 = vmatmul.mubr.f32.gmra.mxu0 %v324
        %v395 = vpop.f32.mrf.mxu0
        %v396 = vadd.f32 0.0, %v395
        %v397 = vpop.f32.mrf.mxu0
        %398 = vmatprep.mubr.f32.mxu0 0.0
        %399 = vmatmul.mubr.f32.gmra.mxu0 %v327
        %v400 = vpop.f32.mrf.mxu0
        %v401 = vadd.f32 0.0, %v400
        %v402 = vpop.f32.mrf.mxu0
        %403 = vdwg.mxu0
        %s404 = scalar_lea.vmem [#allocation5], 128
        %v405 = vld [vmem:[%s404] sm:$0xff]
        %v406 = vld [vmem:[%s404 + $0x8] sm:$0xff]
        %v407 = vld [vmem:[%s404 + $0x10] sm:$0xff]
        %v408 = vld [vmem:[%s404 + $0x18] sm:$0xff]
        %v409 = vld [vmem:[%s404 + $0x20] sm:$0xff]
        %v410 = vld [vmem:[%s404 + $0x28] sm:$0xff]
        %v411 = vld [vmem:[%s404 + $0x30] sm:$0xff]
        %v412 = vld [vmem:[%s404 + $0x38] sm:$0xff]
        %v413 = vld [vmem:[%s404 + $0x40] sm:$0xff]
        %v414 = vld [vmem:[%s404 + $0x48] sm:$0xff]
        %v415 = vld [vmem:[%s404 + $0x50] sm:$0xff]
        %v416 = vld [vmem:[%s404 + $0x58] sm:$0xff]
        %v417 = vld [vmem:[%s404 + $0x60] sm:$0xff]
        %v418 = vld [vmem:[%s404 + $0x68] sm:$0xff]
        %v419 = vld [vmem:[%s404 + $0x70] sm:$0xff]
        %v420 = vld [vmem:[%s404 + $0x78] sm:$0xff]
        %v421 = vld [vmem:[#allocation5] sm:$0xff]
        %v422 = vld [vmem:[#allocation5 + $0x8] sm:$0xff]
        %v423 = vld [vmem:[#allocation5 + $0x10] sm:$0xff]
        %v424 = vld [vmem:[#allocation5 + $0x18] sm:$0xff]
        %v425 = vld [vmem:[#allocation5 + $0x20] sm:$0xff]
        %v426 = vld [vmem:[#allocation5 + $0x28] sm:$0xff]
        %v427 = vld [vmem:[#allocation5 + $0x30] sm:$0xff]
        %v428 = vld [vmem:[#allocation5 + $0x38] sm:$0xff]
        %v429 = vld [vmem:[#allocation5 + $0x40] sm:$0xff]
        %v430 = vld [vmem:[#allocation5 + $0x48] sm:$0xff]
        %v431 = vld [vmem:[#allocation5 + $0x50] sm:$0xff]
        %v432 = vld [vmem:[#allocation5 + $0x58] sm:$0xff]
        %v433 = vld [vmem:[#allocation5 + $0x60] sm:$0xff]
        %v434 = vld [vmem:[#allocation5 + $0x68] sm:$0xff]
        %v435 = vld [vmem:[#allocation5 + $0x70] sm:$0xff]
        %v436 = vld [vmem:[#allocation5 + $0x78] sm:$0xff]
        %437 = vmatprep.subr.mxu0 0.0
        %438 = vmatpush1.msra.mxu0 %v436
        %439 = vmatprep.subr.mxu0 0.0
        %440 = vmatpush1.msra.mxu0 %v435
        %441 = vmatprep.subr.mxu0 0.0
        %442 = vmatpush1.msra.mxu0 %v434
        %443 = vmatprep.subr.mxu0 0.0
        %444 = vmatpush1.msra.mxu0 %v433
        %445 = vmatprep.subr.mxu0 0.0
        %446 = vmatpush1.msra.mxu0 %v432
        %447 = vmatprep.subr.mxu0 0.0
        %448 = vmatpush1.msra.mxu0 %v431
        %449 = vmatprep.subr.mxu0 0.0
        %450 = vmatpush1.msra.mxu0 %v430
        %451 = vmatprep.subr.mxu0 0.0
        %452 = vmatpush1.msra.mxu0 %v429
        %453 = vmatprep.subr.mxu0 0.0
        %454 = vmatpush1.msra.mxu0 %v428
        %455 = vmatprep.subr.mxu0 0.0
        %456 = vmatpush1.msra.mxu0 %v427
        %457 = vmatprep.subr.mxu0 0.0
        %458 = vmatpush1.msra.mxu0 %v426
        %459 = vmatprep.subr.mxu0 0.0
        %460 = vmatpush1.msra.mxu0 %v425
        %461 = vmatprep.subr.mxu0 0.0
        %462 = vmatpush1.msra.mxu0 %v424
        %463 = vmatprep.subr.mxu0 0.0
        %464 = vmatpush1.msra.mxu0 %v423
        %465 = vmatprep.subr.mxu0 0.0
        %466 = vmatpush1.msra.mxu0 %v422
        %467 = vmatprep.subr.mxu0 0.0
        %468 = vmatpush1.msra.mxu0 %v421
        %469 = vmatprep.subr.mxu0 0.0
        %470 = vmatpush2.msra.mxu0 0.0
        %471 = vmatprep.subr.mxu0 0.0
        %472 = vmatpush2.msra.mxu0 0.0
        %473 = vmatprep.subr.mxu0 0.0
        %474 = vmatpush2.msra.mxu0 0.0
        %475 = vmatprep.subr.mxu0 0.0
        %476 = vmatpush2.msra.mxu0 0.0
        %477 = vmatprep.subr.mxu0 0.0
        %478 = vmatpush2.msra.mxu0 0.0
        %479 = vmatprep.subr.mxu0 0.0
        %480 = vmatpush2.msra.mxu0 0.0
        %481 = vmatprep.subr.mxu0 0.0
        %482 = vmatpush2.msra.mxu0 0.0
        %483 = vmatprep.subr.mxu0 0.0
        %484 = vmatpush2.msra.mxu0 0.0
        %485 = vmatprep.subr.mxu0 0.0
        %486 = vmatpush2.msra.mxu0 0.0
        %487 = vmatprep.subr.mxu0 0.0
        %488 = vmatpush2.msra.mxu0 0.0
        %489 = vmatprep.subr.mxu0 0.0
        %490 = vmatpush2.msra.mxu0 0.0
        %491 = vmatprep.subr.mxu0 0.0
        %492 = vmatpush2.msra.mxu0 0.0
        %493 = vmatprep.subr.mxu0 0.0
        %494 = vmatpush2.msra.mxu0 0.0
        %495 = vmatprep.subr.mxu0 0.0
        %496 = vmatpush2.msra.mxu0 0.0
        %497 = vmatprep.subr.mxu0 0.0
        %498 = vmatpush2.msra.mxu0 0.0
        %499 = vmatprep.subr.mxu0 0.0
        %500 = vmatpush2.msra.mxu0 0.0
        %501 = vmatprep.mubr.f32.mxu0 0.0
        %502 = vmatmul.mubr.f32.gmra.mxu0 %v315
        %v503 = vpop.f32.mrf.mxu0
        %v504 = vadd.f32 0.0, %v503
        %v505 = vpop.f32.mrf.mxu0
        %506 = vmatprep.mubr.f32.mxu0 0.0
        %507 = vmatmul.mubr.f32.gmra.mxu0 %v320
        %v508 = vpop.f32.mrf.mxu0
        %v509 = vadd.f32 0.0, %v508
        %v510 = vpop.f32.mrf.mxu0
        %511 = vdwg.mxu0
        %512 = vmatprep.subr.mxu0 0.0
        %513 = vmatpush1.msra.mxu0 %v420
        %514 = vmatprep.subr.mxu0 0.0
        %515 = vmatpush1.msra.mxu0 %v419
        %516 = vmatprep.subr.mxu0 0.0
        %517 = vmatpush1.msra.mxu0 %v418
        %518 = vmatprep.subr.mxu0 0.0
        %519 = vmatpush1.msra.mxu0 %v417
        %520 = vmatprep.subr.mxu0 0.0
        %521 = vmatpush1.msra.mxu0 %v416
        %522 = vmatprep.subr.mxu0 0.0
        %523 = vmatpush1.msra.mxu0 %v415
        %524 = vmatprep.subr.mxu0 0.0
        %525 = vmatpush1.msra.mxu0 %v414
        %526 = vmatprep.subr.mxu0 0.0
        %527 = vmatpush1.msra.mxu0 %v413
        %528 = vmatprep.subr.mxu0 0.0
        %529 = vmatpush1.msra.mxu0 %v412
        %530 = vmatprep.subr.mxu0 0.0
        %531 = vmatpush1.msra.mxu0 %v411
        %532 = vmatprep.subr.mxu0 0.0
        %533 = vmatpush1.msra.mxu0 %v410
        %534 = vmatprep.subr.mxu0 0.0
        %535 = vmatpush1.msra.mxu0 %v409
        %536 = vmatprep.subr.mxu0 0.0
        %537 = vmatpush1.msra.mxu0 %v408
        %538 = vmatprep.subr.mxu0 0.0
        %539 = vmatpush1.msra.mxu0 %v407
        %540 = vmatprep.subr.mxu0 0.0
        %541 = vmatpush1.msra.mxu0 %v406
        %542 = vmatprep.subr.mxu0 0.0
        %543 = vmatpush1.msra.mxu0 %v405
        %544 = vmatprep.subr.mxu0 0.0
        %545 = vmatpush2.msra.mxu0 0.0
        %546 = vmatprep.subr.mxu0 0.0
        %547 = vmatpush2.msra.mxu0 0.0
        %548 = vmatprep.subr.mxu0 0.0
        %549 = vmatpush2.msra.mxu0 0.0
        %550 = vmatprep.subr.mxu0 0.0
        %551 = vmatpush2.msra.mxu0 0.0
        %552 = vmatprep.subr.mxu0 0.0
        %553 = vmatpush2.msra.mxu0 0.0
        %554 = vmatprep.subr.mxu0 0.0
        %555 = vmatpush2.msra.mxu0 0.0
        %556 = vmatprep.subr.mxu0 0.0
        %557 = vmatpush2.msra.mxu0 0.0
        %558 = vmatprep.subr.mxu0 0.0
        %559 = vmatpush2.msra.mxu0 0.0
        %560 = vmatprep.subr.mxu0 0.0
        %561 = vmatpush2.msra.mxu0 0.0
        %562 = vmatprep.subr.mxu0 0.0
        %563 = vmatpush2.msra.mxu0 0.0
        %564 = vmatprep.subr.mxu0 0.0
        %565 = vmatpush2.msra.mxu0 0.0
        %566 = vmatprep.subr.mxu0 0.0
        %567 = vmatpush2.msra.mxu0 0.0
        %568 = vmatprep.subr.mxu0 0.0
        %569 = vmatpush2.msra.mxu0 0.0
        %570 = vmatprep.subr.mxu0 0.0
        %571 = vmatpush2.msra.mxu0 0.0
        %572 = vmatprep.subr.mxu0 0.0
        %573 = vmatpush2.msra.mxu0 0.0
        %574 = vmatprep.subr.mxu0 0.0
        %575 = vmatpush2.msra.mxu0 0.0
        %576 = vmatprep.mubr.f32.mxu0 0.0
        %577 = vmatmul.mubr.f32.gmra.mxu0 %v218
        %v578 = vpop.f32.mrf.mxu0
        %v579 = vadd.f32 %v504, %v578
        %v580 = vpop.f32.mrf.mxu0
        %581 = vmatprep.mubr.f32.mxu0 0.0
        %582 = vmatmul.mubr.f32.gmra.mxu0 %v219
        %v583 = vpop.f32.mrf.mxu0
        %v584 = vadd.f32 %v509, %v583
        %v585 = vpop.f32.mrf.mxu0
        %586 = vdwg.mxu0
        %s587 = scalar_lea.vmem [#allocation5], 256
        %v588 = vld [vmem:[%s587] sm:$0xff]
        %v589 = vld [vmem:[%s587 + $0x8] sm:$0xff]
        %v590 = vld [vmem:[%s587 + $0x10] sm:$0xff]
        %v591 = vld [vmem:[%s587 + $0x18] sm:$0xff]
        %v592 = vld [vmem:[%s587 + $0x20] sm:$0xff]
        %v593 = vld [vmem:[%s587 + $0x28] sm:$0xff]
        %v594 = vld [vmem:[%s587 + $0x30] sm:$0xff]
        %v595 = vld [vmem:[%s587 + $0x38] sm:$0xff]
        %v596 = vld [vmem:[%s587 + $0x40] sm:$0xff]
        %v597 = vld [vmem:[%s587 + $0x48] sm:$0xff]
        %v598 = vld [vmem:[%s587 + $0x50] sm:$0xff]
        %v599 = vld [vmem:[%s587 + $0x58] sm:$0xff]
        %v600 = vld [vmem:[%s587 + $0x60] sm:$0xff]
        %v601 = vld [vmem:[%s587 + $0x68] sm:$0xff]
        %v602 = vld [vmem:[%s587 + $0x70] sm:$0xff]
        %v603 = vld [vmem:[%s587 + $0x78] sm:$0xff]
        %604 = vmatprep.subr.mxu0 0.0
        %605 = vmatpush1.msra.mxu0 %v603
        %606 = vmatprep.subr.mxu0 0.0
        %607 = vmatpush1.msra.mxu0 %v602
        %608 = vmatprep.subr.mxu0 0.0
        %609 = vmatpush1.msra.mxu0 %v601
        %610 = vmatprep.subr.mxu0 0.0
        %611 = vmatpush1.msra.mxu0 %v600
        %612 = vmatprep.subr.mxu0 0.0
        %613 = vmatpush1.msra.mxu0 %v599
        %614 = vmatprep.subr.mxu0 0.0
        %615 = vmatpush1.msra.mxu0 %v598
        %616 = vmatprep.subr.mxu0 0.0
        %617 = vmatpush1.msra.mxu0 %v597
        %618 = vmatprep.subr.mxu0 0.0
        %619 = vmatpush1.msra.mxu0 %v596
        %620 = vmatprep.subr.mxu0 0.0
        %621 = vmatpush1.msra.mxu0 %v595
        %622 = vmatprep.subr.mxu0 0.0
        %623 = vmatpush1.msra.mxu0 %v594
        %624 = vmatprep.subr.mxu0 0.0
        %625 = vmatpush1.msra.mxu0 %v593
        %626 = vmatprep.subr.mxu0 0.0
        %627 = vmatpush1.msra.mxu0 %v592
        %628 = vmatprep.subr.mxu0 0.0
        %629 = vmatpush1.msra.mxu0 %v591
        %630 = vmatprep.subr.mxu0 0.0
        %631 = vmatpush1.msra.mxu0 %v590
        %632 = vmatprep.subr.mxu0 0.0
        %633 = vmatpush1.msra.mxu0 %v589
        %634 = vmatprep.subr.mxu0 0.0
        %635 = vmatpush1.msra.mxu0 %v588
        %636 = vmatprep.subr.mxu0 0.0
        %637 = vmatpush2.msra.mxu0 0.0
        %638 = vmatprep.subr.mxu0 0.0
        %639 = vmatpush2.msra.mxu0 0.0
        %640 = vmatprep.subr.mxu0 0.0
        %641 = vmatpush2.msra.mxu0 0.0
        %642 = vmatprep.subr.mxu0 0.0
        %643 = vmatpush2.msra.mxu0 0.0
        %644 = vmatprep.subr.mxu0 0.0
        %645 = vmatpush2.msra.mxu0 0.0
        %646 = vmatprep.subr.mxu0 0.0
        %647 = vmatpush2.msra.mxu0 0.0
        %648 = vmatprep.subr.mxu0 0.0
        %649 = vmatpush2.msra.mxu0 0.0
        %650 = vmatprep.subr.mxu0 0.0
        %651 = vmatpush2.msra.mxu0 0.0
        %652 = vmatprep.subr.mxu0 0.0
        %653 = vmatpush2.msra.mxu0 0.0
        %654 = vmatprep.subr.mxu0 0.0
        %655 = vmatpush2.msra.mxu0 0.0
        %656 = vmatprep.subr.mxu0 0.0
        %657 = vmatpush2.msra.mxu0 0.0
        %658 = vmatprep.subr.mxu0 0.0
        %659 = vmatpush2.msra.mxu0 0.0
        %660 = vmatprep.subr.mxu0 0.0
        %661 = vmatpush2.msra.mxu0 0.0
        %662 = vmatprep.subr.mxu0 0.0
        %663 = vmatpush2.msra.mxu0 0.0
        %664 = vmatprep.subr.mxu0 0.0
        %665 = vmatpush2.msra.mxu0 0.0
        %666 = vmatprep.subr.mxu0 0.0
        %667 = vmatpush2.msra.mxu0 0.0
        %668 = vmatprep.mubr.f32.mxu0 0.0
        %669 = vmatmul.mubr.f32.gmra.mxu0 %v396
        %v670 = vpop.f32.mrf.mxu0
        %v671 = vadd.f32 0.0, %v670
        %v672 = vpop.f32.mrf.mxu0
        %673 = vmatprep.mubr.f32.mxu0 0.0
        %674 = vmatmul.mubr.f32.gmra.mxu0 %v401
        %v675 = vpop.f32.mrf.mxu0
        %v676 = vadd.f32 0.0, %v675
        %v677 = vpop.f32.mrf.mxu0
        %678 = vdwg.mxu0
        %v679 = vadd.f32 %v579, %v671
        %v680 = vadd.f32 %v584, %v676
        %v681 = vmax.f32 %v679, 0.0
        %v682 = vmax.f32 %v680, 0.0
        %683 = vmatprep.subr.mxu0 0.0
        %684 = vmatpush1.msra.mxu0 0.0
        %685 = vmatprep.subr.mxu0 0.0
        %686 = vmatpush1.msra.mxu0 0.0
        %687 = vmatprep.subr.mxu0 0.0
        %688 = vmatpush1.msra.mxu0 0.0
        %689 = vmatprep.subr.mxu0 0.0
        %690 = vmatpush1.msra.mxu0 0.0
        %691 = vmatprep.subr.mxu0 0.0
        %692 = vmatpush1.msra.mxu0 0.0
        %693 = vmatprep.subr.mxu0 0.0
        %694 = vmatpush1.msra.mxu0 0.0
        %695 = vmatprep.subr.mxu0 0.0
        %696 = vmatpush1.msra.mxu0 0.0
        %697 = vmatprep.subr.mxu0 0.0
        %698 = vmatpush1.msra.mxu0 0.0
        %699 = vmatprep.subr.mxu0 0.0
        %700 = vmatpush1.msra.mxu0 0.0
        %701 = vmatprep.subr.mxu0 0.0
        %702 = vmatpush1.msra.mxu0 0.0
        %703 = vmatprep.subr.mxu0 0.0
        %704 = vmatpush1.msra.mxu0 0.0
        %705 = vmatprep.subr.mxu0 0.0
        %706 = vmatpush1.msra.mxu0 0.0
        %707 = vmatprep.subr.mxu0 0.0
        %708 = vmatpush1.msra.mxu0 0.0
        %709 = vmatprep.subr.mxu0 0.0
        %710 = vmatpush1.msra.mxu0 0.0
        %711 = vmatprep.subr.mxu0 0.0
        %712 = vmatpush1.msra.mxu0 %v682
        %713 = vmatprep.subr.mxu0 0.0
        %714 = vmatpush1.msra.mxu0 %v681
        %715 = vmatprep.subr.mxu0 0.0
        %716 = vmatpush2.msra.mxu0 0.0
        %717 = vmatprep.subr.mxu0 0.0
        %718 = vmatpush2.msra.mxu0 0.0
        %719 = vmatprep.subr.mxu0 0.0
        %720 = vmatpush2.msra.mxu0 0.0
        %721 = vmatprep.subr.mxu0 0.0
        %722 = vmatpush2.msra.mxu0 0.0
        %723 = vmatprep.subr.mxu0 0.0
        %724 = vmatpush2.msra.mxu0 0.0
        %725 = vmatprep.subr.mxu0 0.0
        %726 = vmatpush2.msra.mxu0 0.0
        %727 = vmatprep.subr.mxu0 0.0
        %728 = vmatpush2.msra.mxu0 0.0
        %729 = vmatprep.subr.mxu0 0.0
        %730 = vmatpush2.msra.mxu0 0.0
        %731 = vmatprep.subr.mxu0 0.0
        %732 = vmatpush2.msra.mxu0 0.0
        %733 = vmatprep.subr.mxu0 0.0
        %734 = vmatpush2.msra.mxu0 0.0
        %735 = vmatprep.subr.mxu0 0.0
        %736 = vmatpush2.msra.mxu0 0.0
        %737 = vmatprep.subr.mxu0 0.0
        %738 = vmatpush2.msra.mxu0 0.0
        %739 = vmatprep.subr.mxu0 0.0
        %740 = vmatpush2.msra.mxu0 0.0
        %741 = vmatprep.subr.mxu0 0.0
        %742 = vmatpush2.msra.mxu0 0.0
        %743 = vmatprep.subr.mxu0 0.0
        %744 = vmatpush2.msra.mxu0 0.0
        %745 = vmatprep.subr.mxu0 0.0
        %746 = vmatpush2.msra.mxu0 0.0
        %747 = vmatprep.mubr.f32.mxu0 0.0
        %748 = vmatmul.mubr.f32.gmra.mxu0 %v243
        %v749 = vpop.f32.mrf.mxu0
        %v750 = vadd.f32 0.0, %v749
        %v751 = vpop.f32.mrf.mxu0
        %752 = vmatprep.mubr.f32.mxu0 0.0
        %753 = vmatmul.mubr.f32.gmra.mxu0 %v246
        %v754 = vpop.f32.mrf.mxu0
        %v755 = vadd.f32 0.0, %v754
        %v756 = vpop.f32.mrf.mxu0
        %757 = vdwg.mxu0
        %758 = vmatprep.subr.mxu0 0.0
        %759 = vmatpush1.msra.mxu0 0.0
        %760 = vmatprep.subr.mxu0 0.0
        %761 = vmatpush1.msra.mxu0 0.0
        %762 = vmatprep.subr.mxu0 0.0
        %763 = vmatpush1.msra.mxu0 0.0
        %764 = vmatprep.subr.mxu0 0.0
        %765 = vmatpush1.msra.mxu0 0.0
        %766 = vmatprep.subr.mxu0 0.0
        %767 = vmatpush1.msra.mxu0 0.0
        %768 = vmatprep.subr.mxu0 0.0
        %769 = vmatpush1.msra.mxu0 0.0
        %770 = vmatprep.subr.mxu0 0.0
        %771 = vmatpush1.msra.mxu0 0.0
        %772 = vmatprep.subr.mxu0 0.0
        %773 = vmatpush1.msra.mxu0 0.0
        %774 = vmatprep.subr.mxu0 0.0
        %775 = vmatpush1.msra.mxu0 0.0
        %776 = vmatprep.subr.mxu0 0.0
        %777 = vmatpush1.msra.mxu0 0.0
        %778 = vmatprep.subr.mxu0 0.0
        %779 = vmatpush1.msra.mxu0 0.0
        %780 = vmatprep.subr.mxu0 0.0
        %781 = vmatpush1.msra.mxu0 0.0
        %782 = vmatprep.subr.mxu0 0.0
        %783 = vmatpush1.msra.mxu0 0.0
        %784 = vmatprep.subr.mxu0 0.0
        %785 = vmatpush1.msra.mxu0 0.0
        %786 = vmatprep.subr.mxu0 0.0
        %787 = vmatpush1.msra.mxu0 %v682
        %788 = vmatprep.subr.mxu0 0.0
        %789 = vmatpush1.msra.mxu0 %v681
        %790 = vmatprep.subr.mxu0 0.0
        %791 = vmatpush2.msra.mxu0 0.0
        %792 = vmatprep.subr.mxu0 0.0
        %793 = vmatpush2.msra.mxu0 0.0
        %794 = vmatprep.subr.mxu0 0.0
        %795 = vmatpush2.msra.mxu0 0.0
        %796 = vmatprep.subr.mxu0 0.0
        %797 = vmatpush2.msra.mxu0 0.0
        %798 = vmatprep.subr.mxu0 0.0
        %799 = vmatpush2.msra.mxu0 0.0
        %800 = vmatprep.subr.mxu0 0.0
        %801 = vmatpush2.msra.mxu0 0.0
        %802 = vmatprep.subr.mxu0 0.0
        %803 = vmatpush2.msra.mxu0 0.0
        %804 = vmatprep.subr.mxu0 0.0
        %805 = vmatpush2.msra.mxu0 0.0
        %806 = vmatprep.subr.mxu0 0.0
        %807 = vmatpush2.msra.mxu0 0.0
        %808 = vmatprep.subr.mxu0 0.0
        %809 = vmatpush2.msra.mxu0 0.0
        %810 = vmatprep.subr.mxu0 0.0
        %811 = vmatpush2.msra.mxu0 0.0
        %812 = vmatprep.subr.mxu0 0.0
        %813 = vmatpush2.msra.mxu0 0.0
        %814 = vmatprep.subr.mxu0 0.0
        %815 = vmatpush2.msra.mxu0 0.0
        %816 = vmatprep.subr.mxu0 0.0
        %817 = vmatpush2.msra.mxu0 0.0
        %818 = vmatprep.subr.mxu0 0.0
        %819 = vmatpush2.msra.mxu0 0.0
        %820 = vmatprep.subr.mxu0 0.0
        %821 = vmatpush2.msra.mxu0 0.0
        %822 = vmatprep.mubr.f32.mxu0 0.0
        %823 = vmatmul.mubr.f32.gmra.mxu0 %v324
        %v824 = vpop.f32.mrf.mxu0
        %v825 = vadd.f32 0.0, %v824
        %v826 = vpop.f32.mrf.mxu0
        %827 = vmatprep.mubr.f32.mxu0 0.0
        %828 = vmatmul.mubr.f32.gmra.mxu0 %v327
        %v829 = vpop.f32.mrf.mxu0
        %v830 = vadd.f32 0.0, %v829
        %v831 = vpop.f32.mrf.mxu0
        %832 = vdwg.mxu0
        %s833 = scalar_lea.vmem [#allocation7], 128
        %v834 = vld [vmem:[%s833] sm:$0xff]
        %v835 = vld [vmem:[%s833 + $0x8] sm:$0xff]
        %v836 = vld [vmem:[%s833 + $0x10] sm:$0xff]
        %v837 = vld [vmem:[%s833 + $0x18] sm:$0xff]
        %v838 = vld [vmem:[%s833 + $0x20] sm:$0xff]
        %v839 = vld [vmem:[%s833 + $0x28] sm:$0xff]
        %v840 = vld [vmem:[%s833 + $0x30] sm:$0xff]
        %v841 = vld [vmem:[%s833 + $0x38] sm:$0xff]
        %v842 = vld [vmem:[%s833 + $0x40] sm:$0xff]
        %v843 = vld [vmem:[%s833 + $0x48] sm:$0xff]
        %v844 = vld [vmem:[%s833 + $0x50] sm:$0xff]
        %v845 = vld [vmem:[%s833 + $0x58] sm:$0xff]
        %v846 = vld [vmem:[%s833 + $0x60] sm:$0xff]
        %v847 = vld [vmem:[%s833 + $0x68] sm:$0xff]
        %v848 = vld [vmem:[%s833 + $0x70] sm:$0xff]
        %v849 = vld [vmem:[%s833 + $0x78] sm:$0xff]
        %v850 = vld [vmem:[#allocation7] sm:$0xff]
        %v851 = vld [vmem:[#allocation7 + $0x8] sm:$0xff]
        %v852 = vld [vmem:[#allocation7 + $0x10] sm:$0xff]
        %v853 = vld [vmem:[#allocation7 + $0x18] sm:$0xff]
        %v854 = vld [vmem:[#allocation7 + $0x20] sm:$0xff]
        %v855 = vld [vmem:[#allocation7 + $0x28] sm:$0xff]
        %v856 = vld [vmem:[#allocation7 + $0x30] sm:$0xff]
        %v857 = vld [vmem:[#allocation7 + $0x38] sm:$0xff]
        %v858 = vld [vmem:[#allocation7 + $0x40] sm:$0xff]
        %v859 = vld [vmem:[#allocation7 + $0x48] sm:$0xff]
        %v860 = vld [vmem:[#allocation7 + $0x50] sm:$0xff]
        %v861 = vld [vmem:[#allocation7 + $0x58] sm:$0xff]
        %v862 = vld [vmem:[#allocation7 + $0x60] sm:$0xff]
        %v863 = vld [vmem:[#allocation7 + $0x68] sm:$0xff]
        %v864 = vld [vmem:[#allocation7 + $0x70] sm:$0xff]
        %v865 = vld [vmem:[#allocation7 + $0x78] sm:$0xff]
        %866 = vmatprep.subr.mxu0 0.0
        %867 = vmatpush1.msra.mxu0 %v865
        %868 = vmatprep.subr.mxu0 0.0
        %869 = vmatpush1.msra.mxu0 %v864
        %870 = vmatprep.subr.mxu0 0.0
        %871 = vmatpush1.msra.mxu0 %v863
        %872 = vmatprep.subr.mxu0 0.0
        %873 = vmatpush1.msra.mxu0 %v862
        %874 = vmatprep.subr.mxu0 0.0
        %875 = vmatpush1.msra.mxu0 %v861
        %876 = vmatprep.subr.mxu0 0.0
        %877 = vmatpush1.msra.mxu0 %v860
        %878 = vmatprep.subr.mxu0 0.0
        %879 = vmatpush1.msra.mxu0 %v859
        %880 = vmatprep.subr.mxu0 0.0
        %881 = vmatpush1.msra.mxu0 %v858
        %882 = vmatprep.subr.mxu0 0.0
        %883 = vmatpush1.msra.mxu0 %v857
        %884 = vmatprep.subr.mxu0 0.0
        %885 = vmatpush1.msra.mxu0 %v856
        %886 = vmatprep.subr.mxu0 0.0
        %887 = vmatpush1.msra.mxu0 %v855
        %888 = vmatprep.subr.mxu0 0.0
        %889 = vmatpush1.msra.mxu0 %v854
        %890 = vmatprep.subr.mxu0 0.0
        %891 = vmatpush1.msra.mxu0 %v853
        %892 = vmatprep.subr.mxu0 0.0
        %893 = vmatpush1.msra.mxu0 %v852
        %894 = vmatprep.subr.mxu0 0.0
        %895 = vmatpush1.msra.mxu0 %v851
        %896 = vmatprep.subr.mxu0 0.0
        %897 = vmatpush1.msra.mxu0 %v850
        %898 = vmatprep.subr.mxu0 0.0
        %899 = vmatpush2.msra.mxu0 0.0
        %900 = vmatprep.subr.mxu0 0.0
        %901 = vmatpush2.msra.mxu0 0.0
        %902 = vmatprep.subr.mxu0 0.0
        %903 = vmatpush2.msra.mxu0 0.0
        %904 = vmatprep.subr.mxu0 0.0
        %905 = vmatpush2.msra.mxu0 0.0
        %906 = vmatprep.subr.mxu0 0.0
        %907 = vmatpush2.msra.mxu0 0.0
        %908 = vmatprep.subr.mxu0 0.0
        %909 = vmatpush2.msra.mxu0 0.0
        %910 = vmatprep.subr.mxu0 0.0
        %911 = vmatpush2.msra.mxu0 0.0
        %912 = vmatprep.subr.mxu0 0.0
        %913 = vmatpush2.msra.mxu0 0.0
        %914 = vmatprep.subr.mxu0 0.0
        %915 = vmatpush2.msra.mxu0 0.0
        %916 = vmatprep.subr.mxu0 0.0
        %917 = vmatpush2.msra.mxu0 0.0
        %918 = vmatprep.subr.mxu0 0.0
        %919 = vmatpush2.msra.mxu0 0.0
        %920 = vmatprep.subr.mxu0 0.0
        %921 = vmatpush2.msra.mxu0 0.0
        %922 = vmatprep.subr.mxu0 0.0
        %923 = vmatpush2.msra.mxu0 0.0
        %924 = vmatprep.subr.mxu0 0.0
        %925 = vmatpush2.msra.mxu0 0.0
        %926 = vmatprep.subr.mxu0 0.0
        %927 = vmatpush2.msra.mxu0 0.0
        %928 = vmatprep.subr.mxu0 0.0
        %929 = vmatpush2.msra.mxu0 0.0
        %930 = vmatprep.mubr.f32.mxu0 0.0
        %931 = vmatmul.mubr.f32.gmra.mxu0 %v750
        %v932 = vpop.f32.mrf.mxu0
        %v933 = vadd.f32 0.0, %v932
        %v934 = vpop.f32.mrf.mxu0
        %935 = vmatprep.mubr.f32.mxu0 0.0
        %936 = vmatmul.mubr.f32.gmra.mxu0 %v755
        %v937 = vpop.f32.mrf.mxu0
        %v938 = vadd.f32 0.0, %v937
        %v939 = vpop.f32.mrf.mxu0
        %940 = vdwg.mxu0
        %941 = vmatprep.subr.mxu0 0.0
        %942 = vmatpush1.msra.mxu0 %v849
        %943 = vmatprep.subr.mxu0 0.0
        %944 = vmatpush1.msra.mxu0 %v848
        %945 = vmatprep.subr.mxu0 0.0
        %946 = vmatpush1.msra.mxu0 %v847
        %947 = vmatprep.subr.mxu0 0.0
        %948 = vmatpush1.msra.mxu0 %v846
        %949 = vmatprep.subr.mxu0 0.0
        %950 = vmatpush1.msra.mxu0 %v845
        %951 = vmatprep.subr.mxu0 0.0
        %952 = vmatpush1.msra.mxu0 %v844
        %953 = vmatprep.subr.mxu0 0.0
        %954 = vmatpush1.msra.mxu0 %v843
        %955 = vmatprep.subr.mxu0 0.0
        %956 = vmatpush1.msra.mxu0 %v842
        %957 = vmatprep.subr.mxu0 0.0
        %958 = vmatpush1.msra.mxu0 %v841
        %959 = vmatprep.subr.mxu0 0.0
        %960 = vmatpush1.msra.mxu0 %v840
        %961 = vmatprep.subr.mxu0 0.0
        %962 = vmatpush1.msra.mxu0 %v839
        %963 = vmatprep.subr.mxu0 0.0
        %964 = vmatpush1.msra.mxu0 %v838
        %965 = vmatprep.subr.mxu0 0.0
        %966 = vmatpush1.msra.mxu0 %v837
        %967 = vmatprep.subr.mxu0 0.0
        %968 = vmatpush1.msra.mxu0 %v836
        %969 = vmatprep.subr.mxu0 0.0
        %970 = vmatpush1.msra.mxu0 %v835
        %971 = vmatprep.subr.mxu0 0.0
        %972 = vmatpush1.msra.mxu0 %v834
        %973 = vmatprep.subr.mxu0 0.0
        %974 = vmatpush2.msra.mxu0 0.0
        %975 = vmatprep.subr.mxu0 0.0
        %976 = vmatpush2.msra.mxu0 0.0
        %977 = vmatprep.subr.mxu0 0.0
        %978 = vmatpush2.msra.mxu0 0.0
        %979 = vmatprep.subr.mxu0 0.0
        %980 = vmatpush2.msra.mxu0 0.0
        %981 = vmatprep.subr.mxu0 0.0
        %982 = vmatpush2.msra.mxu0 0.0
        %983 = vmatprep.subr.mxu0 0.0
        %984 = vmatpush2.msra.mxu0 0.0
        %985 = vmatprep.subr.mxu0 0.0
        %986 = vmatpush2.msra.mxu0 0.0
        %987 = vmatprep.subr.mxu0 0.0
        %988 = vmatpush2.msra.mxu0 0.0
        %989 = vmatprep.subr.mxu0 0.0
        %990 = vmatpush2.msra.mxu0 0.0
        %991 = vmatprep.subr.mxu0 0.0
        %992 = vmatpush2.msra.mxu0 0.0
        %993 = vmatprep.subr.mxu0 0.0
        %994 = vmatpush2.msra.mxu0 0.0
        %995 = vmatprep.subr.mxu0 0.0
        %996 = vmatpush2.msra.mxu0 0.0
        %997 = vmatprep.subr.mxu0 0.0
        %998 = vmatpush2.msra.mxu0 0.0
        %999 = vmatprep.subr.mxu0 0.0
        %1000 = vmatpush2.msra.mxu0 0.0
        %1001 = vmatprep.subr.mxu0 0.0
        %1002 = vmatpush2.msra.mxu0 0.0
        %1003 = vmatprep.subr.mxu0 0.0
        %1004 = vmatpush2.msra.mxu0 0.0
        %1005 = vmatprep.mubr.f32.mxu0 0.0
        %1006 = vmatmul.mubr.f32.gmra.mxu0 %v681
        %v1007 = vpop.f32.mrf.mxu0
        %v1008 = vadd.f32 %v933, %v1007
        %v1009 = vpop.f32.mrf.mxu0
        %1010 = vmatprep.mubr.f32.mxu0 0.0
        %1011 = vmatmul.mubr.f32.gmra.mxu0 %v682
        %v1012 = vpop.f32.mrf.mxu0
        %v1013 = vadd.f32 %v938, %v1012
        %v1014 = vpop.f32.mrf.mxu0
        %1015 = vdwg.mxu0
        %s1016 = scalar_lea.vmem [#allocation7], 256
        %v1017 = vld [vmem:[%s1016] sm:$0xff]
        %v1018 = vld [vmem:[%s1016 + $0x8] sm:$0xff]
        %v1019 = vld [vmem:[%s1016 + $0x10] sm:$0xff]
        %v1020 = vld [vmem:[%s1016 + $0x18] sm:$0xff]
        %v1021 = vld [vmem:[%s1016 + $0x20] sm:$0xff]
        %v1022 = vld [vmem:[%s1016 + $0x28] sm:$0xff]
        %v1023 = vld [vmem:[%s1016 + $0x30] sm:$0xff]
        %v1024 = vld [vmem:[%s1016 + $0x38] sm:$0xff]
        %v1025 = vld [vmem:[%s1016 + $0x40] sm:$0xff]
        %v1026 = vld [vmem:[%s1016 + $0x48] sm:$0xff]
        %v1027 = vld [vmem:[%s1016 + $0x50] sm:$0xff]
        %v1028 = vld [vmem:[%s1016 + $0x58] sm:$0xff]
        %v1029 = vld [vmem:[%s1016 + $0x60] sm:$0xff]
        %v1030 = vld [vmem:[%s1016 + $0x68] sm:$0xff]
        %v1031 = vld [vmem:[%s1016 + $0x70] sm:$0xff]
        %v1032 = vld [vmem:[%s1016 + $0x78] sm:$0xff]
        %1033 = vmatprep.subr.mxu0 0.0
        %1034 = vmatpush1.msra.mxu0 %v1032
        %1035 = vmatprep.subr.mxu0 0.0
        %1036 = vmatpush1.msra.mxu0 %v1031
        %1037 = vmatprep.subr.mxu0 0.0
        %1038 = vmatpush1.msra.mxu0 %v1030
        %1039 = vmatprep.subr.mxu0 0.0
        %1040 = vmatpush1.msra.mxu0 %v1029
        %1041 = vmatprep.subr.mxu0 0.0
        %1042 = vmatpush1.msra.mxu0 %v1028
        %1043 = vmatprep.subr.mxu0 0.0
        %1044 = vmatpush1.msra.mxu0 %v1027
        %1045 = vmatprep.subr.mxu0 0.0
        %1046 = vmatpush1.msra.mxu0 %v1026
        %1047 = vmatprep.subr.mxu0 0.0
        %1048 = vmatpush1.msra.mxu0 %v1025
        %1049 = vmatprep.subr.mxu0 0.0
        %1050 = vmatpush1.msra.mxu0 %v1024
        %1051 = vmatprep.subr.mxu0 0.0
        %1052 = vmatpush1.msra.mxu0 %v1023
        %1053 = vmatprep.subr.mxu0 0.0
        %1054 = vmatpush1.msra.mxu0 %v1022
        %1055 = vmatprep.subr.mxu0 0.0
        %1056 = vmatpush1.msra.mxu0 %v1021
        %1057 = vmatprep.subr.mxu0 0.0
        %1058 = vmatpush1.msra.mxu0 %v1020
        %1059 = vmatprep.subr.mxu0 0.0
        %1060 = vmatpush1.msra.mxu0 %v1019
        %1061 = vmatprep.subr.mxu0 0.0
        %1062 = vmatpush1.msra.mxu0 %v1018
        %1063 = vmatprep.subr.mxu0 0.0
        %1064 = vmatpush1.msra.mxu0 %v1017
        %1065 = vmatprep.subr.mxu0 0.0
        %1066 = vmatpush2.msra.mxu0 0.0
        %1067 = vmatprep.subr.mxu0 0.0
        %1068 = vmatpush2.msra.mxu0 0.0
        %1069 = vmatprep.subr.mxu0 0.0
        %1070 = vmatpush2.msra.mxu0 0.0
        %1071 = vmatprep.subr.mxu0 0.0
        %1072 = vmatpush2.msra.mxu0 0.0
        %1073 = vmatprep.subr.mxu0 0.0
        %1074 = vmatpush2.msra.mxu0 0.0
        %1075 = vmatprep.subr.mxu0 0.0
        %1076 = vmatpush2.msra.mxu0 0.0
        %1077 = vmatprep.subr.mxu0 0.0
        %1078 = vmatpush2.msra.mxu0 0.0
        %1079 = vmatprep.subr.mxu0 0.0
        %1080 = vmatpush2.msra.mxu0 0.0
        %1081 = vmatprep.subr.mxu0 0.0
        %1082 = vmatpush2.msra.mxu0 0.0
        %1083 = vmatprep.subr.mxu0 0.0
        %1084 = vmatpush2.msra.mxu0 0.0
        %1085 = vmatprep.subr.mxu0 0.0
        %1086 = vmatpush2.msra.mxu0 0.0
        %1087 = vmatprep.subr.mxu0 0.0
        %1088 = vmatpush2.msra.mxu0 0.0
        %1089 = vmatprep.subr.mxu0 0.0
        %1090 = vmatpush2.msra.mxu0 0.0
        %1091 = vmatprep.subr.mxu0 0.0
        %1092 = vmatpush2.msra.mxu0 0.0
        %1093 = vmatprep.subr.mxu0 0.0
        %1094 = vmatpush2.msra.mxu0 0.0
        %1095 = vmatprep.subr.mxu0 0.0
        %1096 = vmatpush2.msra.mxu0 0.0
        %1097 = vmatprep.mubr.f32.mxu0 0.0
        %1098 = vmatmul.mubr.f32.gmra.mxu0 %v825
        %v1099 = vpop.f32.mrf.mxu0
        %v1100 = vadd.f32 0.0, %v1099
        %v1101 = vpop.f32.mrf.mxu0
        %1102 = vmatprep.mubr.f32.mxu0 0.0
        %1103 = vmatmul.mubr.f32.gmra.mxu0 %v830
        %v1104 = vpop.f32.mrf.mxu0
        %v1105 = vadd.f32 0.0, %v1104
        %v1106 = vpop.f32.mrf.mxu0
        %1107 = vdwg.mxu0
        %v1108 = vadd.f32 %v1008, %v1100
        %v1109 = vadd.f32 %v1013, %v1105
        %v1110 = vadd.f32 %v1108, %v218
        %v1111 = vadd.f32 %v1109, %v219
        %v1112 = vmax.f32 %v1110, 0.0
        %v1113 = vmax.f32 %v1111, 0.0
        %1114 = vst [vmem:[%s217] sm:$0xff] %v1112
        %1115 = vst [vmem:[%s217 + $0x8] sm:$0xff] %v1113
        %s1116 = sand.u32 %s97, 1
        %s1117 = scalar_lea.sflag [#allocation4], %s1116
        %s1118 = sand.u32 %s97, 1
        %s1119 = smul.addr %s1118, 16
        %s1120 = scalar_lea.vmem [#allocation8], %s1119
        // Predicated region
        $region45: #{tpu_custom_call.1} parent=31 // pred_check
          %p1121 = pneg %p107
        $region46: #{tpu_custom_call.1} parent=31 // pred_check_branch
          %1123 = sbr.rel (%p1121) target = $region48
        $region47: #{tpu_custom_call.1} parent=31 // pred_region
          %s1125 = ssub.s32 256, 256
          %1126 = vsyncadd %s1117, %s1125
          %s1127 = smul.addr %s21, 2
          %s1128 = smul.addr %s1127, 128
          %s1129 = scalar_lea.hbm %s3, %s1128
          %s1130 = sshll.u32 %s1120, 4
          %s1131 = int_to_ptr.vmem [resolvable:$true] %s1130
          %1136 = dma.vmem_to_hbm [thread:$0]  %s1131, 256, %s1129, %s1117, 128, 128, 8
        $region48: #{tpu_custom_call.1} parent=31 // pred_fallthru
          _
      $region32: #{tpu_custom_call.1} parent=5 // pred_fallthru
        _
      %p1137 = scmp.le.s32.totalorder 2, %s16
      // Predicated region
      $region49: #{tpu_custom_call.1} parent=5 // pred_check
        %p1138 = pneg %p1137
      $region50: #{tpu_custom_call.1} parent=5 // pred_check_branch
        %1140 = sbr.rel (%p1138) target = $region52
      $region51: #{tpu_custom_call.1} parent=5 // pred_region
        %s1141 = ssub.s32 %s16, 2
        // Predicated region
        $region53: #{tpu_custom_call.1} parent=51 // pred_check
          %p1142 = pneg %p113
        $region54: #{tpu_custom_call.1} parent=51 // pred_check_branch
          %1144 = sbr.rel (%p1142) target = $region56
        $region55: #{tpu_custom_call.1} parent=51 // pred_region
          %s1145 = sand.u32 %s98, 1
          %s1146 = scalar_lea.sflag [#allocation4], %s1145
          %s1147 = sand.u32 %s98, 1
          %s1148 = smul.addr %s1147, 16
          %s1149 = scalar_lea.vmem [#allocation8], %s1148
          %1150 = dma.done %s1146, 256
        $region56: #{tpu_custom_call.1} parent=51 // pred_fallthru
          _
      $region52: #{tpu_custom_call.1} parent=5 // pred_fallthru
        _
    $region6: #{tpu_custom_call.1} parent=1 // loop_footer
      %s20 = sadd.s32 1, %s16
    $region7: #{tpu_custom_call.1} parent=1 // loop_footer_branch
      %15 = sbr.rel target = $region3
    $region8: #{tpu_custom_call.1} parent=1 // loop_exit
      _
    %1151 = vsyncpa [#allocation3], 1
    %s1152 = scalar_lea.sflag [#allocation3], 1
    %1153 = vsyncpa %s1152, 1
    %1154 = vsyncpa [#allocation6], 1
    %1155 = vsyncpa [#allocation4], 1
    %s1156 = scalar_lea.sflag [#allocation4], 1
    %1157 = vsyncpa %s1156, 1

</llo_original>
